<compile_context>
chip_gen: v7x
topology: tpu7x:2x2x1
jax: 0.10.0
libtpu: 0.0.40
codegen_flags: <defaults>
</compile_context>

<pallas_src>
import functools

import jax
import jax.numpy as jnp
from jax.experimental import pallas as pl
from jax.experimental.pallas import tpu as pltpu


def _sdpa_kernel(scale_ref, q_ref, k_ref, v_ref, out_ref, attn_ref, *,
                 mxu_dtype, exact_recip):
    # Refs are 2-D: the flattened (batch*head) dim is squeezed by the BlockSpec.
    q = q_ref[...]                                        # [TLq, dk]  (input dtype)
    k = k_ref[...]                                        # [dk,  Lk]
    v = v_ref[...]                                        # [Lk,  dv]

    # Fold scale into q: scales Lq*dk elements instead of Lq*Lk scores.  Cast the
    # scalar to the input dtype so bf16 inputs stay on the bf16 VALU path.
    scale = scale_ref[0].astype(q.dtype)
    q_scaled = q * scale

    if mxu_dtype is not None:
        q_scaled = q_scaled.astype(mxu_dtype)
        k = k.astype(mxu_dtype)

    # q @ k on the MXU, f32 accumulation.
    scores = jnp.dot(q_scaled, k, preferred_element_type=jnp.float32)   # [TLq, Lk] f32

    # Numerically stable softmax over the key axis (f32 math).
    m = jnp.max(scores, axis=-1, keepdims=True)
    e = jnp.exp(scores - m)
    denom = jnp.sum(e, axis=-1, keepdims=True)
    weights = e * pl.reciprocal(denom, approx=not exact_recip)          # [TLq, Lk] f32

    # TODO(synk): attention_dropout > 0 (training mode) not implemented; p=0.0 is identity.

    mm_dtype = v_ref.dtype if mxu_dtype is None else mxu_dtype
    out = jnp.dot(weights.astype(mm_dtype), v.astype(mm_dtype),
                  preferred_element_type=jnp.float32)                   # [TLq, dv] f32

    out_ref[...] = out.astype(out_ref.dtype)
    attn_ref[...] = weights.astype(attn_ref.dtype)


_MIN_VMEM_LIMIT = 32 << 20


def _vmem_capacity_bytes():
    """Physical per-core VMEM; conservative (v7x-sized) fallback if the query fails."""
    try:
        return int(pltpu.get_tpu_info().vmem_capacity_bytes)
    except Exception:
        return 64 << 20   # conservative: only means smaller tiles, never unsafe


def _working_set_bytes(block_q, Lk, dk, dv, in_isz, out_isz, attn_isz, kv_bufs):
    """Per-step VMEM footprint: buffered I/O tiles + f32 softmax intermediates."""
    q_in = 2 * block_q * dk * in_isz                       # double-buffered q tiles
    kv_in = kv_bufs * (dk * Lk + Lk * dv) * in_isz         # K / V (1 or 2 buffers)
    out_o = 2 * block_q * dv * out_isz                     # double-buffered output
    attn_o = 2 * block_q * Lk * attn_isz                   # double-buffered attn weights
    interm = (3 * block_q * Lk * 4                         # scores / exp / weights (f32)
              + block_q * Lk * in_isz                      # weights cast for 2nd matmul
              + block_q * dk * 4)                          # scaled-q temporary
    scratch = 1 << 20                                      # Mosaic internal scratch allowance
    return q_in + kv_in + out_o + attn_o + interm + scratch


def _pick_tiling(Lq, Lk, dk, dv, in_isz, out_isz, attn_isz, budget):
    """Choose (block_q, kv_buffer_count).

    block_q is kept >= min(128, Lq) so MXU rows stay filled and the attn/out
    store tiles stay sublane-dense.  K/V drop to a single buffer only when that
    is what keeps block_q >= 128 within the VMEM budget, and only when there is
    more than one q tile per (batch*head) to amortize the exposed K/V DMA.
    """
    min_bq = min(128, Lq)
    max_bq = 512 if budget >= (64 << 20) else 256          # bigger tiles on 128-MiB parts
    for kv_bufs in (2, 1):
        for cand in (512, 256, 128, min_bq):
            bq = min(cand, Lq)
            if bq > max_bq or bq < min_bq:
                continue
            if kv_bufs == 1 and pl.cdiv(Lq, bq) <= 1:
                continue
            if _working_set_bytes(bq, Lk, dk, dv, in_isz, out_isz,
                                  attn_isz, kv_bufs) <= budget:
                return bq, kv_bufs
    # Nothing fits the budget: keep the MXU-friendly minimum tile anyway.
    # TODO(synk): for extreme Lk, tile Lk with an online-softmax (flash-style) pass instead.
    return min_bq, (1 if pl.cdiv(Lq, min_bq) > 1 else 2)


def sdp_attention(q, k, v, scale, *, block_q=None, attn_dtype=None,
                  mxu_dtype=None, exact_softmax_recip=True):
    """Scaled dot-product attention.

    q: [B,H,Lq,dk], k: [B,H,dk,Lk], v: [B,H,Lk,dv], scale: scalar (or [1]) f32.

    attn_dtype: dtype of the returned attention weights (default: q.dtype; pass
        jnp.bfloat16 to halve the dominant HBM writeback stream).
    mxu_dtype:  optional reduced dtype (e.g. jnp.bfloat16) for the two MXU matmuls
        (f32 accumulation; softmax math stays f32). Default None = input dtype.
    """
    B, H, Lq, dk = q.shape
    _, _, _, Lk = k.shape
    _, _, _, dv = v.shape
    BH = B * H

    # Flatten (B, H) into one large parallel grid axis.
    q3 = q.reshape(BH, Lq, dk)
    k3 = k.reshape(BH, dk, Lk)
    v3 = v.reshape(BH, Lk, dv)
    scale1 = jnp.asarray(scale, dtype=jnp.float32).reshape((1,))

    out_dtype = q.dtype
    attn_out_dtype = q.dtype if attn_dtype is None else jnp.dtype(attn_dtype)

    in_isz = jnp.dtype(q.dtype).itemsize
    out_isz = jnp.dtype(out_dtype).itemsize
    attn_isz = jnp.dtype(attn_out_dtype).itemsize

    cap = _vmem_capacity_bytes()
    budget = int(0.70 * cap)                # generation-aware tile-picking budget
    if block_q is None:
        block_q, kv_bufs = _pick_tiling(Lq, Lk, dk, dv, in_isz, out_isz,
                                        attn_isz, budget)
    else:
        block_q = min(block_q, Lq)
        kv_bufs = 2
    n_q_tiles = pl.cdiv(Lq, block_q)

    def _kv_spec(shape, idx_map):
        # K/V block indices are constant across the inner q-tile axis; when VMEM is
        # tight, keep them single-buffered instead of shrinking block_q.
        if kv_bufs == 1:
            return pl.BlockSpec(shape, idx_map, pipeline_mode=pl.Buffered(1))
        return pl.BlockSpec(shape, idx_map)

    in_specs = [
        pl.BlockSpec(memory_space=pltpu.MemorySpace.SMEM),                     # scale
        pl.BlockSpec((pl.Squeezed(), block_q, dk), lambda bh, i: (bh, i, 0)),  # q tile
        _kv_spec((pl.Squeezed(), dk, Lk), lambda bh, i: (bh, 0, 0)),           # k (full)
        _kv_spec((pl.Squeezed(), Lk, dv), lambda bh, i: (bh, 0, 0)),           # v (full)
    ]
    out_specs = (
        pl.BlockSpec((pl.Squeezed(), block_q, dv), lambda bh, i: (bh, i, 0)),  # output
        pl.BlockSpec((pl.Squeezed(), block_q, Lk), lambda bh, i: (bh, i, 0)),  # attn weights
    )
    out_shapes = (
        jax.ShapeDtypeStruct((BH, Lq, dv), out_dtype),
        jax.ShapeDtypeStruct((BH, Lq, Lk), attn_out_dtype),
    )

    # Scoped-VMEM limit sized from the full working set, with headroom; never
    # request all of physical VMEM (cap at 0.75 * capacity).
    ws = _working_set_bytes(block_q, Lk, dk, dv, in_isz, out_isz, attn_isz, kv_bufs)
    vmem_limit = int(max(_MIN_VMEM_LIMIT, 1.25 * ws))
    vmem_limit = int(min(vmem_limit, 0.75 * cap))

    kernel = functools.partial(
        _sdpa_kernel,
        mxu_dtype=None if mxu_dtype is None else jnp.dtype(mxu_dtype),
        exact_recip=exact_softmax_recip,
    )

    out3, attn3 = pl.pallas_call(
        kernel,
        out_shape=out_shapes,
        grid=(BH, n_q_tiles),
        in_specs=in_specs,
        out_specs=out_specs,
        compiler_params=pltpu.CompilerParams(
            dimension_semantics=("parallel", "parallel"),
            vmem_limit_bytes=vmem_limit,
        ),
    )(scale1, q3, k3, v3)

    return out3.reshape(B, H, Lq, dv), attn3.reshape(B, H, Lq, Lk)


if __name__ == "__main__":
    # Small but lane-friendly shapes: d_model = n_heads * head_dim = 4 * 64 = 256.
    B, H = 2, 4
    Lq = Lk = 128            # attn tile last dim is a multiple of 128 (lane-dense stores)
    dk = dv = 64             # head_dim

    key = jax.random.PRNGKey(0)
    kq, kk, kv = jax.random.split(key, 3)
    q = jax.random.normal(kq, (B, H, Lq, dk), dtype=jnp.float32)
    k = jax.random.normal(kk, (B, H, dk, Lk), dtype=jnp.float32)
    v = jax.random.normal(kv, (B, H, Lk, dv), dtype=jnp.float32)

    # Module init: scale = head_dim ** -0.5 (learnable only if lsa=True).
    scale = jnp.asarray(dk ** (-0.5), dtype=jnp.float32)

    out, attn = sdp_attention(q, k, v, scale)
    jax.block_until_ready((out, attn))

    # Plain-JAX reference (matches the PyTorch forward with dropout p=0).
    scores_ref = jnp.einsum("bhqd,bhdk->bhqk", q, k) * scale
    attn_ref = jax.nn.softmax(scores_ref, axis=-1)
    out_ref = jnp.einsum("bhqk,bhkd->bhqd", attn_ref, v)

    assert jnp.allclose(attn, attn_ref, atol=2e-3, rtol=2e-3)
    assert jnp.allclose(out, out_ref, atol=2e-3, rtol=2e-3)

    print("KERNEL_OK")
</pallas_src>

<mosaic_0001>
module attributes {stable_mosaic.version = 11 : i64} {
  func.func @_sdpa_kernel(%arg0: i32, %arg1: i32, %arg2: memref<1xf32, #tpu.memory_space<smem>>, %arg3: memref<1x128x64xf32, #tpu.memory_space<vmem>>, %arg4: memref<1x64x128xf32, #tpu.memory_space<vmem>>, %arg5: memref<1x128x64xf32, #tpu.memory_space<vmem>>, %arg6: memref<1x128x64xf32, #tpu.memory_space<vmem>>, %arg7: memref<1x128x128xf32, #tpu.memory_space<vmem>>) attributes {dimension_semantics = [#tpu.dimension_semantics<parallel>, #tpu.dimension_semantics<parallel>], iteration_bounds = array<i64: 8, 1>, scalar_prefetch = 0 : i64, scratch_operands = 0 : i64, tpu.core_type = #tpu.core_type<tc>, window_params = [{transform_indices = @transform_0, window_bounds = array<i64: 1>}, {transform_indices = @transform_1, window_bounds = array<i64: 1, 128, 64>}, {transform_indices = @transform_2, window_bounds = array<i64: 1, 64, 128>}, {transform_indices = @transform_3, window_bounds = array<i64: 1, 128, 64>}, {transform_indices = @transform_4, window_bounds = array<i64: 1, 128, 64>}, {transform_indices = @transform_5, window_bounds = array<i64: 1, 128, 128>}]} {
    %c0 = arith.constant 0 : index
    %c0_0 = arith.constant 0 : index
    %c0_1 = arith.constant 0 : index
    %0 = vector.load %arg3[%c0, %c0_0, %c0_1] : memref<1x128x64xf32, #tpu.memory_space<vmem>>, vector<1x128x64xf32>
    %1 = vector.shape_cast %0 : vector<1x128x64xf32> to vector<128x64xf32>
    %c0_2 = arith.constant 0 : index
    %c0_3 = arith.constant 0 : index
    %c0_4 = arith.constant 0 : index
    %2 = vector.load %arg4[%c0_2, %c0_3, %c0_4] : memref<1x64x128xf32, #tpu.memory_space<vmem>>, vector<1x64x128xf32>
    %3 = vector.shape_cast %2 : vector<1x64x128xf32> to vector<64x128xf32>
    %c0_5 = arith.constant 0 : index
    %c0_6 = arith.constant 0 : index
    %c0_7 = arith.constant 0 : index
    %4 = vector.load %arg5[%c0_5, %c0_6, %c0_7] : memref<1x128x64xf32, #tpu.memory_space<vmem>>, vector<1x128x64xf32>
    %5 = vector.shape_cast %4 : vector<1x128x64xf32> to vector<128x64xf32>
    %c0_8 = arith.constant 0 : index
    %6 = memref.load %arg2[%c0_8] : memref<1xf32, #tpu.memory_space<smem>>
    %7 = vector.broadcast %6 : f32 to vector<128x64xf32>
    %8 = arith.mulf %1, %7 : vector<128x64xf32>
    %cst = arith.constant dense<0.000000e+00> : vector<128x128xf32>
    %9 = tpu.matmul %8, %3, %cst {dimension_numbers = #tpu.dot_dimension_numbers<[1], [0], [0], [1], [0, 0, 1, 1], [], []>} : vector<128x64xf32>, vector<64x128xf32>, vector<128x128xf32> -> vector<128x128xf32>
    %cst_9 = arith.constant dense<0xFF800000> : vector<128xf32>
    %10 = vector.multi_reduction <maximumf>, %9, %cst_9 [1] : vector<128x128xf32> to vector<128xf32>
    %11 = vector.shape_cast %10 : vector<128xf32> to vector<128x1xf32>
    %12 = vector.broadcast %11 : vector<128x1xf32> to vector<128x128xf32>
    %13 = arith.subf %9, %12 : vector<128x128xf32>
    %14 = math.exp %13 : vector<128x128xf32>
    %cst_10 = arith.constant dense<0.000000e+00> : vector<128xf32>
    %15 = vector.multi_reduction <add>, %14, %cst_10 [1] : vector<128x128xf32> to vector<128xf32>
    %16 = vector.shape_cast %15 : vector<128xf32> to vector<128x1xf32>
    %17 = tpu.reciprocal %16 : vector<128x1xf32> -> vector<128x1xf32>
    %18 = vector.broadcast %17 : vector<128x1xf32> to vector<128x128xf32>
    %19 = arith.mulf %14, %18 : vector<128x128xf32>
    %cst_11 = arith.constant dense<0.000000e+00> : vector<128x64xf32>
    %20 = tpu.matmul %19, %5, %cst_11 {dimension_numbers = #tpu.dot_dimension_numbers<[1], [0], [0], [1], [0, 0, 1, 1], [], []>} : vector<128x128xf32>, vector<128x64xf32>, vector<128x64xf32> -> vector<128x64xf32>
    %c0_12 = arith.constant 0 : index
    %c0_13 = arith.constant 0 : index
    %c0_14 = arith.constant 0 : index
    %21 = vector.load %arg6[%c0_12, %c0_13, %c0_14] : memref<1x128x64xf32, #tpu.memory_space<vmem>>, vector<1x128x64xf32>
    %22 = vector.shape_cast %21 : vector<1x128x64xf32> to vector<128x64xf32>
    %23 = vector.shape_cast %20 : vector<128x64xf32> to vector<1x128x64xf32>
    tpu.vector_store %arg6[%c0_12, %c0_13, %c0_14], %23 {strides = array<i32>} : memref<1x128x64xf32, #tpu.memory_space<vmem>>, vector<1x128x64xf32>,
    %c0_15 = arith.constant 0 : index
    %c0_16 = arith.constant 0 : index
    %c0_17 = arith.constant 0 : index
    %24 = vector.load %arg7[%c0_15, %c0_16, %c0_17] : memref<1x128x128xf32, #tpu.memory_space<vmem>>, vector<1x128x128xf32>
    %25 = vector.shape_cast %24 : vector<1x128x128xf32> to vector<128x128xf32>
    %26 = vector.shape_cast %19 : vector<128x128xf32> to vector<1x128x128xf32>
    tpu.vector_store %arg7[%c0_15, %c0_16, %c0_17], %26 {strides = array<i32>} : memref<1x128x128xf32, #tpu.memory_space<vmem>>, vector<1x128x128xf32>,
    return
  }
  func.func @transform_0(%arg0: i32, %arg1: i32) -> i32 {
    %c0_i32 = arith.constant 0 : i32
    %c0_i32_0 = arith.constant 0 : i32
    return %c0_i32 : i32
  }
  func.func @transform_1(%arg0: i32, %arg1: i32) -> (i32, i32, i32) {
    %c0_i32 = arith.constant 0 : i32
    %c0_i32_0 = arith.constant 0 : i32
    return %arg0, %arg1, %c0_i32 : i32, i32, i32
  }
  func.func @transform_2(%arg0: i32, %arg1: i32) -> (i32, i32, i32) {
    %c0_i32 = arith.constant 0 : i32
    %c0_i32_0 = arith.constant 0 : i32
    %c0_i32_1 = arith.constant 0 : i32
    return %arg0, %c0_i32, %c0_i32_0 : i32, i32, i32
  }
  func.func @transform_3(%arg0: i32, %arg1: i32) -> (i32, i32, i32) {
    %c0_i32 = arith.constant 0 : i32
    %c0_i32_0 = arith.constant 0 : i32
    %c0_i32_1 = arith.constant 0 : i32
    return %arg0, %c0_i32, %c0_i32_0 : i32, i32, i32
  }
  func.func @transform_4(%arg0: i32, %arg1: i32) -> (i32, i32, i32) {
    %c0_i32 = arith.constant 0 : i32
    %c0_i32_0 = arith.constant 0 : i32
    return %arg0, %arg1, %c0_i32 : i32, i32, i32
  }
  func.func @transform_5(%arg0: i32, %arg1: i32) -> (i32, i32, i32) {
    %c0_i32 = arith.constant 0 : i32
    %c0_i32_0 = arith.constant 0 : i32
    return %arg0, %arg1, %c0_i32 : i32, i32, i32
  }
}

</mosaic_0001>

<llo_original>
// kernel: tpu_custom_call.1
$region0: #{tpu_custom_call.1}
  #allocation0 [shape = 'u32[]', space=smem, size = 0x4, offset = 0x4, fixed_abs, tag = 'smem constant byte address 0x4 - core index']
  #allocation1 [shape = 'u32[144,128]{1,0:T(1,128)}', space=vmem, size = 0x12000, scoped, tag = 'internal scratch']
  #allocation2 [shape = 'f32[1]{0:T(128)S(6)}', space=smem, size = 0x200, scoped, tag = 'scoped memory for tpu_custom_call.1']
  %s0 = inlined_call_operand.<no memory space> [shape: f32[1], index: 0, kind: input, shape index: {}]
  %s1 = inlined_call_operand.vmem [shape: f32[8,128,64], index: 1, kind: input, shape index: {}]
  %s2 = inlined_call_operand.vmem [shape: f32[8,64,128], index: 2, kind: input, shape index: {}]
  %s3 = inlined_call_operand.vmem [shape: f32[8,128,64], index: 3, kind: input, shape index: {}]
  %s4 = inlined_call_operand.vmem [shape: f32[8,128,64], index: 4, kind: output, shape index: {0}]
  %s5 = inlined_call_operand.hbm [shape: f32[8,128,128], index: 5, kind: output, shape index: {1}]
  %6 = xla_tuple %s4, %s5
  %s7 = sld [smem:[#allocation0]]
  $region57: #{tpu_custom_call.1} parent=0
    _
  %s9 = ssub.s32 1, %s7
  %s10 = scalar_select 0, %s9, %s7
  %11 = sst [smem:[#allocation2]] %s0
  $region1: #{tpu_custom_call.1} parent=0
    #allocation3 [shape = 'u8[131072]{0}', space=vmem, size = 0x20000, scoped, tag = 'output window, operand 1']
    #allocation4 [shape = 's32[2]{0}', space=sflag, size = 0x8, scoped, tag = 'scoped memory for tpu_custom_call.1']
    %12 = vsyncpa [#allocation4], 0
    %s13 = scalar_lea.sflag [#allocation4], 1
    %14 = vsyncpa %s13, 0
    loop: start=0, step=1, limit=10
    $region2: #{tpu_custom_call.1} parent=1 // loop_pre_header
      _
    $region3: #{tpu_custom_call.1} parent=1 // loop_header
      %s16 = sphi 0, %s20
      %p17 = scmp.ge.s32.totalorder %s16, 10
      %s23 = sphi 0, %s35
      %s24 = sphi 0, %s31
      %s25 = sphi 0, %s23
      %s26 = sphi 0, %s24
      %s27 = sphi 0, %s25
      %s28 = sphi 0, %s26
      %s36 = sphi 0, %s36
      %s38 = sphi 0, %s36
      %s39 = sphi 0, %s38
      %s53 = sphi 0, %s39
      %s61 = sphi 0, %s63
      %s64 = sphi 0, %s61
      %s65 = sphi 0, %s64
      %s81 = sphi 0, %s65
      %s87 = sphi 0, %s89
      %s90 = sphi 0, %s87
      %s91 = sphi 0, %s90
      %s107 = sphi 0, %s91
      %s113 = sphi 0, %s115
      %s116 = sphi 0, %s113
      %s117 = sphi 0, %s116
      %s133 = sphi 0, %s117
      %s141 = sphi 0, %s143
      %s144 = sphi 0, %s141
      %s145 = sphi 0, %s144
      %s161 = sphi 0, %s145
      %s169 = sphi 0, %s171
      %s172 = sphi 0, %s169
      %s173 = sphi 0, %s172
      %s189 = sphi 0, %s173
    $region4: #{tpu_custom_call.1} parent=1 // loop_header_branch
      %19 = sbr.rel (%p17) target = $region8
    $region5: #{tpu_custom_call.1} parent=1 // loop_body
      %s21 = ssub.s32 %s16, 1
      %s22 = ssub.s32 %s16, 2
      %s29 = sadd.s32 1, %s24
      %p30 = scmp.ge.s32.totalorder %s29, 1
      %s31 = scalar_select %p30, 0, %s29
      %s32 = sadd.s32 1, %s23
      %s33 = scalar_select %p30, %s32, %s23
      %p34 = scmp.ge.s32.totalorder %s33, 8
      %s35 = scalar_select %p34, 0, %s33
      %s37 = sadd.s32 %s36, 1
      %p40 = scmp.eq.s32.totalorder %s16, 7
      %p41 = scmp.ne.s32.totalorder %s36, %s38
      %p42 = scmp.eq.s32.totalorder %s16, 0
      %p43 = por %p41, %p42
      %p44 = scmp.ne.s32.totalorder %s36, %s38
      %p45 = scmp.eq.s32.totalorder %s21, 7
      %p46 = por %p44, %p45
      %p47 = scmp.ne.s32.totalorder %s38, %s39
      %p48 = scmp.eq.s32.totalorder %s21, 0
      %p49 = por %p47, %p48
      %p50 = scmp.ne.s32.totalorder %s38, %s39
      %p51 = scmp.eq.s32.totalorder %s22, 7
      %p52 = por %p50, %p51
      %p54 = scmp.ne.s32.totalorder %s39, %s53
      %p55 = scmp.eq.s32.totalorder %s22, 0
      %p56 = por %p54, %p55
      %s57 = ssub.s32 %s23, %s35
      %s58 = ssub.s32 %s24, %s31
      %s59 = sor.u32 %s57, %s58
      %p60 = scmp.eq.s32.totalorder %s59, 0
      %s62 = sadd.s32 %s61, 1
      %s63 = scalar_select %p60, %s61, %s62
      %p66 = pneg %p60
      %p67 = scmp.eq.s32.totalorder %s16, 7
      %p68 = por %p66, %p67
      %p69 = scmp.ne.s32.totalorder %s61, %s64
      %p70 = scmp.eq.s32.totalorder %s16, 0
      %p71 = por %p69, %p70
      %p72 = scmp.ne.s32.totalorder %s61, %s64
      %p73 = scmp.eq.s32.totalorder %s21, 7
      %p74 = por %p72, %p73
      %p75 = scmp.ne.s32.totalorder %s64, %s65
      %p76 = scmp.eq.s32.totalorder %s21, 0
      %p77 = por %p75, %p76
      %p78 = scmp.ne.s32.totalorder %s64, %s65
      %p79 = scmp.eq.s32.totalorder %s22, 7
      %p80 = por %p78, %p79
      %p82 = scmp.ne.s32.totalorder %s65, %s81
      %p83 = scmp.eq.s32.totalorder %s22, 0
      %p84 = por %p82, %p83
      %s85 = ssub.s32 %s23, %s35
      %p86 = scmp.eq.s32.totalorder %s85, 0
      %s88 = sadd.s32 %s87, 1
      %s89 = scalar_select %p86, %s87, %s88
      %p92 = pneg %p86
      %p93 = scmp.eq.s32.totalorder %s16, 7
      %p94 = por %p92, %p93
      %p95 = scmp.ne.s32.totalorder %s87, %s90
      %p96 = scmp.eq.s32.totalorder %s16, 0
      %p97 = por %p95, %p96
      %p98 = scmp.ne.s32.totalorder %s87, %s90
      %p99 = scmp.eq.s32.totalorder %s21, 7
      %p100 = por %p98, %p99
      %p101 = scmp.ne.s32.totalorder %s90, %s91
      %p102 = scmp.eq.s32.totalorder %s21, 0
      %p103 = por %p101, %p102
      %p104 = scmp.ne.s32.totalorder %s90, %s91
      %p105 = scmp.eq.s32.totalorder %s22, 7
      %p106 = por %p104, %p105
      %p108 = scmp.ne.s32.totalorder %s91, %s107
      %p109 = scmp.eq.s32.totalorder %s22, 0
      %p110 = por %p108, %p109
      %s111 = ssub.s32 %s23, %s35
      %p112 = scmp.eq.s32.totalorder %s111, 0
      %s114 = sadd.s32 %s113, 1
      %s115 = scalar_select %p112, %s113, %s114
      %p118 = pneg %p112
      %p119 = scmp.eq.s32.totalorder %s16, 7
      %p120 = por %p118, %p119
      %p121 = scmp.ne.s32.totalorder %s113, %s116
      %p122 = scmp.eq.s32.totalorder %s16, 0
      %p123 = por %p121, %p122
      %p124 = scmp.ne.s32.totalorder %s113, %s116
      %p125 = scmp.eq.s32.totalorder %s21, 7
      %p126 = por %p124, %p125
      %p127 = scmp.ne.s32.totalorder %s116, %s117
      %p128 = scmp.eq.s32.totalorder %s21, 0
      %p129 = por %p127, %p128
      %p130 = scmp.ne.s32.totalorder %s116, %s117
      %p131 = scmp.eq.s32.totalorder %s22, 7
      %p132 = por %p130, %p131
      %p134 = scmp.ne.s32.totalorder %s117, %s133
      %p135 = scmp.eq.s32.totalorder %s22, 0
      %p136 = por %p134, %p135
      %s137 = ssub.s32 %s23, %s35
      %s138 = ssub.s32 %s24, %s31
      %s139 = sor.u32 %s137, %s138
      %p140 = scmp.eq.s32.totalorder %s139, 0
      %s142 = sadd.s32 %s141, 1
      %s143 = scalar_select %p140, %s141, %s142
      %p146 = pneg %p140
      %p147 = scmp.eq.s32.totalorder %s16, 7
      %p148 = por %p146, %p147
      %p149 = scmp.ne.s32.totalorder %s141, %s144
      %p150 = scmp.eq.s32.totalorder %s16, 0
      %p151 = por %p149, %p150
      %p152 = scmp.ne.s32.totalorder %s141, %s144
      %p153 = scmp.eq.s32.totalorder %s21, 7
      %p154 = por %p152, %p153
      %p155 = scmp.ne.s32.totalorder %s144, %s145
      %p156 = scmp.eq.s32.totalorder %s21, 0
      %p157 = por %p155, %p156
      %p158 = scmp.ne.s32.totalorder %s144, %s145
      %p159 = scmp.eq.s32.totalorder %s22, 7
      %p160 = por %p158, %p159
      %p162 = scmp.ne.s32.totalorder %s145, %s161
      %p163 = scmp.eq.s32.totalorder %s22, 0
      %p164 = por %p162, %p163
      %s165 = ssub.s32 %s23, %s35
      %s166 = ssub.s32 %s24, %s31
      %s167 = sor.u32 %s165, %s166
      %p168 = scmp.eq.s32.totalorder %s167, 0
      %s170 = sadd.s32 %s169, 1
      %s171 = scalar_select %p168, %s169, %s170
      %p174 = pneg %p168
      %p175 = scmp.eq.s32.totalorder %s16, 7
      %p176 = por %p174, %p175
      %p177 = scmp.ne.s32.totalorder %s169, %s172
      %p178 = scmp.eq.s32.totalorder %s16, 0
      %p179 = por %p177, %p178
      %p180 = scmp.ne.s32.totalorder %s169, %s172
      %p181 = scmp.eq.s32.totalorder %s21, 7
      %p182 = por %p180, %p181
      %p183 = scmp.ne.s32.totalorder %s172, %s173
      %p184 = scmp.eq.s32.totalorder %s21, 0
      %p185 = por %p183, %p184
      %p186 = scmp.ne.s32.totalorder %s172, %s173
      %p187 = scmp.eq.s32.totalorder %s22, 7
      %p188 = por %p186, %p187
      %p190 = scmp.ne.s32.totalorder %s173, %s189
      %p191 = scmp.eq.s32.totalorder %s22, 0
      %p192 = por %p190, %p191
      %p193 = scmp.le.s32.totalorder 1, %s16
      %p194 = scmp.lt.s32.totalorder %s16, 9
      %p195 = pnand %p193, %p194
      %p196 = pneg %p195
      // Predicated region
      $region9: #{tpu_custom_call.1} parent=5 // pred_check
        _
      $region10: #{tpu_custom_call.1} parent=5 // pred_check_branch
        %198 = sbr.rel (%p195) target = $region12
      $region11: #{tpu_custom_call.1} parent=5 // pred_region
        %s199 = ssub.s32 %s16, 1
        // Predicated region
        $region13: #{tpu_custom_call.1} parent=11 // pred_check
          %p200 = pneg %p49
        $region14: #{tpu_custom_call.1} parent=11 // pred_check_branch
          %202 = sbr.rel (%p200) target = $region16
        $region15: #{tpu_custom_call.1} parent=11 // pred_region
          _
        $region16: #{tpu_custom_call.1} parent=11 // pred_fallthru
          _
      $region12: #{tpu_custom_call.1} parent=5 // pred_fallthru
        _
      %p203 = scmp.lt.s32.totalorder %s16, 8
      // Predicated region
      $region17: #{tpu_custom_call.1} parent=5 // pred_check
        %p204 = pneg %p203
      $region18: #{tpu_custom_call.1} parent=5 // pred_check_branch
        %206 = sbr.rel (%p204) target = $region20
      $region19: #{tpu_custom_call.1} parent=5 // pred_region
        // Predicated region
        $region21: #{tpu_custom_call.1} parent=19 // pred_check
          %p207 = pneg %p71
        $region22: #{tpu_custom_call.1} parent=19 // pred_check_branch
          %209 = sbr.rel (%p207) target = $region24
        $region23: #{tpu_custom_call.1} parent=19 // pred_region
          %s210 = smul.u32 16, %s24
          %p211 = scmp.lt.s32.totalorder %s23, 7
          %s212 = scalar_select %p211, %s23, 7
          %p213 = scmp.lt.s32.totalorder %s210, 15
          %s214 = scalar_select %p213, %s210, 15
          %s215 = smul.addr %s212, 16
          %s216 = sadd.s32 %s214, %s215
          %s217 = smul.addr %s216, 8
          %s218 = scalar_lea.vmem %s1, %s217
          %s219 = smul.u32 16, %s24
        $region24: #{tpu_custom_call.1} parent=19 // pred_fallthru
          _
        // Predicated region
        $region25: #{tpu_custom_call.1} parent=19 // pred_check
          %p220 = pneg %p97
        $region26: #{tpu_custom_call.1} parent=19 // pred_check_branch
          %222 = sbr.rel (%p220) target = $region28
        $region27: #{tpu_custom_call.1} parent=19 // pred_region
          %p223 = scmp.lt.s32.totalorder %s23, 7
          %s224 = scalar_select %p223, %s23, 7
          %s225 = smul.addr %s224, 8
          %s226 = smul.addr %s225, 8
          %s227 = scalar_lea.vmem %s2, %s226
        $region28: #{tpu_custom_call.1} parent=19 // pred_fallthru
          _
        // Predicated region
        $region29: #{tpu_custom_call.1} parent=19 // pred_check
          %p228 = pneg %p123
        $region30: #{tpu_custom_call.1} parent=19 // pred_check_branch
          %230 = sbr.rel (%p228) target = $region32
        $region31: #{tpu_custom_call.1} parent=19 // pred_region
          %p231 = scmp.lt.s32.totalorder %s23, 7
          %s232 = scalar_select %p231, %s23, 7
          %s233 = smul.addr %s232, 16
          %s234 = smul.addr %s233, 8
          %s235 = scalar_lea.vmem %s3, %s234
        $region32: #{tpu_custom_call.1} parent=19 // pred_fallthru
          _
      $region20: #{tpu_custom_call.1} parent=5 // pred_fallthru
        _
      %p236 = scmp.le.s32.totalorder 1, %s16
      %p237 = scmp.lt.s32.totalorder %s16, 9
      %p238 = pnand %p236, %p237
      %p239 = pneg %p238
      // Predicated region
      $region33: #{tpu_custom_call.1} parent=5 // pred_check
        _
      $region34: #{tpu_custom_call.1} parent=5 // pred_check_branch
        %241 = sbr.rel (%p238) target = $region36
      $region35: #{tpu_custom_call.1} parent=5 // pred_region
        %s242 = ssub.s32 %s16, 1
        %p243 = pneg %p49
        %p244 = pneg %p46
        %s245 = smul.u32 16, %s26
        %p246 = scmp.lt.s32.totalorder %s25, 7
        %s247 = scalar_select %p246, %s25, 7
        %p248 = scmp.lt.s32.totalorder %s245, 15
        %s249 = scalar_select %p248, %s245, 15
        %s250 = smul.addr %s247, 16
        %s251 = sadd.s32 %s249, %s250
        %s252 = smul.addr %s251, 8
        %s253 = scalar_lea.vmem %s1, %s252
        %p254 = pneg %p77
        %p255 = pneg %p74
        %p256 = scmp.lt.s32.totalorder %s25, 7
        %s257 = scalar_select %p256, %s25, 7
        %s258 = smul.addr %s257, 8
        %s259 = smul.addr %s258, 8
        %s260 = scalar_lea.vmem %s2, %s259
        %p261 = pneg %p103
        %p262 = pneg %p100
        %p263 = scmp.lt.s32.totalorder %s25, 7
        %s264 = scalar_select %p263, %s25, 7
        %s265 = smul.addr %s264, 16
        %s266 = smul.addr %s265, 8
        %s267 = scalar_lea.vmem %s3, %s266
        %p268 = pneg %p129
        %p269 = pneg %p126
        %p270 = pneg %p157
        %p271 = pneg %p154
        %s272 = smul.u32 16, %s26
        %p273 = scmp.lt.s32.totalorder %s25, 7
        %s274 = scalar_select %p273, %s25, 7
        %p275 = scmp.lt.s32.totalorder %s272, 15
        %s276 = scalar_select %p275, %s272, 15
        %s277 = smul.addr %s274, 16
        %s278 = sadd.s32 %s276, %s277
        %s279 = smul.addr %s278, 8
        %s280 = scalar_lea.vmem %s4, %s279
        %p281 = pneg %p185
        %p282 = pneg %p182
        %s283 = sand.u32 %s172, 1
        %s284 = scalar_lea.sflag [#allocation4], %s283
        %s285 = sand.u32 %s172, 1
        %s286 = smul.addr %s285, 128
        %s287 = scalar_lea.vmem [#allocation3], %s286
        %s288 = smul.u32 16, %s26
        %p289 = scmp.lt.s32.totalorder %s25, 7
        %s290 = scalar_select %p289, %s25, 7
        %p291 = scmp.lt.s32.totalorder %s288, 15
        %s292 = scalar_select %p291, %s288, 15
        %s293 = smul.addr %s290, 16
        %s294 = sadd.s32 %s292, %s293
        %s295 = smul.addr %s294, 8
        %s296 = scalar_lea.vmem %s1, %s295
        %s297 = smul.u32 16, %s26
        %p298 = scmp.lt.s32.totalorder %s25, 7
        %s299 = scalar_select %p298, %s25, 7
        %s300 = smul.addr %s299, 8
        %s301 = smul.addr %s300, 8
        %s302 = scalar_lea.vmem %s2, %s301
        %p303 = scmp.lt.s32.totalorder %s25, 7
        %s304 = scalar_select %p303, %s25, 7
        %s305 = smul.addr %s304, 16
        %s306 = smul.addr %s305, 8
        %s307 = scalar_lea.vmem %s3, %s306
        %s308 = smul.u32 16, %s26
        %p309 = scmp.lt.s32.totalorder %s25, 7
        %s310 = scalar_select %p309, %s25, 7
        %p311 = scmp.lt.s32.totalorder %s308, 15
        %s312 = scalar_select %p311, %s308, 15
        %s313 = smul.addr %s310, 16
        %s314 = sadd.s32 %s312, %s313
        %s315 = smul.addr %s314, 8
        %s316 = scalar_lea.vmem %s4, %s315
        %s317 = smul.u32 16, %s26
        %s318 = smul.u32 16, %s26
        %v319 = vld [vmem:[%s296] sm:$0xff]
        %v320 = vld [vmem:[%s296 + $0x8] sm:$0xff]
        %v321 = vld [vmem:[%s296 + $0x10] sm:$0xff]
        %v322 = vld [vmem:[%s296 + $0x18] sm:$0xff]
        %v323 = vld [vmem:[%s296 + $0x20] sm:$0xff]
        %v324 = vld [vmem:[%s296 + $0x28] sm:$0xff]
        %v325 = vld [vmem:[%s296 + $0x30] sm:$0xff]
        %v326 = vld [vmem:[%s296 + $0x38] sm:$0xff]
        %v327 = vld [vmem:[%s296 + $0x40] sm:$0xff]
        %v328 = vld [vmem:[%s296 + $0x48] sm:$0xff]
        %v329 = vld [vmem:[%s296 + $0x50] sm:$0xff]
        %v330 = vld [vmem:[%s296 + $0x58] sm:$0xff]
        %v331 = vld [vmem:[%s296 + $0x60] sm:$0xff]
        %v332 = vld [vmem:[%s296 + $0x68] sm:$0xff]
        %v333 = vld [vmem:[%s296 + $0x70] sm:$0xff]
        %v334 = vld [vmem:[%s296 + $0x78] sm:$0xff]
        %v335 = vld [vmem:[%s302] sm:$0xff]
        %v336 = vld [vmem:[%s302 + $0x8] sm:$0xff]
        %v337 = vld [vmem:[%s302 + $0x10] sm:$0xff]
        %v338 = vld [vmem:[%s302 + $0x18] sm:$0xff]
        %v339 = vld [vmem:[%s302 + $0x20] sm:$0xff]
        %v340 = vld [vmem:[%s302 + $0x28] sm:$0xff]
        %v341 = vld [vmem:[%s302 + $0x30] sm:$0xff]
        %v342 = vld [vmem:[%s302 + $0x38] sm:$0xff]
        %v343 = vld [vmem:[%s307] sm:$0xff]
        %v344 = vld [vmem:[%s307 + $0x8] sm:$0xff]
        %v345 = vld [vmem:[%s307 + $0x10] sm:$0xff]
        %v346 = vld [vmem:[%s307 + $0x18] sm:$0xff]
        %v347 = vld [vmem:[%s307 + $0x20] sm:$0xff]
        %v348 = vld [vmem:[%s307 + $0x28] sm:$0xff]
        %v349 = vld [vmem:[%s307 + $0x30] sm:$0xff]
        %v350 = vld [vmem:[%s307 + $0x38] sm:$0xff]
        %v351 = vld [vmem:[%s307 + $0x40] sm:$0xff]
        %v352 = vld [vmem:[%s307 + $0x48] sm:$0xff]
        %v353 = vld [vmem:[%s307 + $0x50] sm:$0xff]
        %v354 = vld [vmem:[%s307 + $0x58] sm:$0xff]
        %v355 = vld [vmem:[%s307 + $0x60] sm:$0xff]
        %v356 = vld [vmem:[%s307 + $0x68] sm:$0xff]
        %v357 = vld [vmem:[%s307 + $0x70] sm:$0xff]
        %v358 = vld [vmem:[%s307 + $0x78] sm:$0xff]
        %s359 = sld [smem:[#allocation2]]
        %v360 = vstv %s359
        %v361 = vmul.f32 %v319, %v360
        %v362 = vmul.f32 %v320, %v360
        %v363 = vmul.f32 %v321, %v360
        %v364 = vmul.f32 %v322, %v360
        %v365 = vmul.f32 %v323, %v360
        %v366 = vmul.f32 %v324, %v360
        %v367 = vmul.f32 %v325, %v360
        %v368 = vmul.f32 %v326, %v360
        %v369 = vmul.f32 %v327, %v360
        %v370 = vmul.f32 %v328, %v360
        %v371 = vmul.f32 %v329, %v360
        %v372 = vmul.f32 %v330, %v360
        %v373 = vmul.f32 %v331, %v360
        %v374 = vmul.f32 %v332, %v360
        %v375 = vmul.f32 %v333, %v360
        %v376 = vmul.f32 %v334, %v360
        %vm377 = vcmask 523264
        %v379 = vsel %vm377, %v361, 0
        %v382 = vsel %vm377, %v362, 0
        %v385 = vsel %vm377, %v363, 0
        %v388 = vsel %vm377, %v364, 0
        %v391 = vsel %vm377, %v365, 0
        %v394 = vsel %vm377, %v366, 0
        %v397 = vsel %vm377, %v367, 0
        %v400 = vsel %vm377, %v368, 0
        %v403 = vsel %vm377, %v369, 0
        %v406 = vsel %vm377, %v370, 0
        %v409 = vsel %vm377, %v371, 0
        %v412 = vsel %vm377, %v372, 0
        %v415 = vsel %vm377, %v373, 0
        %v418 = vsel %vm377, %v374, 0
        %v421 = vsel %vm377, %v375, 0
        %v424 = vsel %vm377, %v376, 0
        %426 = vmatprep.subr.mxu0 0.0
        %427 = vmatpush1.msra.mxu0 %v335
        %428 = vmatprep.subr.mxu0 0.0
        %429 = vmatpush1.msra.mxu0 %v336
        %430 = vmatprep.subr.mxu0 0.0
        %431 = vmatpush1.msra.mxu0 %v337
        %432 = vmatprep.subr.mxu0 0.0
        %433 = vmatpush1.msra.mxu0 %v338
        %434 = vmatprep.subr.mxu0 0.0
        %435 = vmatpush1.msra.mxu0 %v339
        %436 = vmatprep.subr.mxu0 0.0
        %437 = vmatpush1.msra.mxu0 %v340
        %438 = vmatprep.subr.mxu0 0.0
        %439 = vmatpush1.msra.mxu0 %v341
        %440 = vmatprep.subr.mxu0 0.0
        %441 = vmatpush1.msra.mxu0 %v342
        %442 = vmatprep.subr.mxu0 0.0
        %443 = vmatpush1.msra.mxu0 0.0
        %444 = vmatprep.subr.mxu0 0.0
        %445 = vmatpush1.msra.mxu0 0.0
        %446 = vmatprep.subr.mxu0 0.0
        %447 = vmatpush1.msra.mxu0 0.0
        %448 = vmatprep.subr.mxu0 0.0
        %449 = vmatpush1.msra.mxu0 0.0
        %450 = vmatprep.subr.mxu0 0.0
        %451 = vmatpush1.msra.mxu0 0.0
        %452 = vmatprep.subr.mxu0 0.0
        %453 = vmatpush1.msra.mxu0 0.0
        %454 = vmatprep.subr.mxu0 0.0
        %455 = vmatpush1.msra.mxu0 0.0
        %456 = vmatprep.subr.mxu0 0.0
        %457 = vmatpush1.msra.mxu0 0.0
        %458 = vmatprep.subr.mxu0 0.0
        %459 = vmatpush1.msra.mxu0 0.0
        %460 = vmatprep.subr.mxu0 0.0
        %461 = vmatpush1.msra.mxu0 0.0
        %462 = vmatprep.subr.mxu0 0.0
        %463 = vmatpush1.msra.mxu0 0.0
        %464 = vmatprep.subr.mxu0 0.0
        %465 = vmatpush1.msra.mxu0 0.0
        %466 = vmatprep.subr.mxu0 0.0
        %467 = vmatpush1.msra.mxu0 0.0
        %468 = vmatprep.subr.mxu0 0.0
        %469 = vmatpush1.msra.mxu0 0.0
        %470 = vmatprep.subr.mxu0 0.0
        %471 = vmatpush1.msra.mxu0 0.0
        %472 = vmatprep.subr.mxu0 0.0
        %473 = vmatpush1.msra.mxu0 0.0
        %474 = vmatprep.subr.mxu0 0.0
        %475 = vmatpush1.msra.mxu0 0.0
        %476 = vmatprep.subr.mxu0 0.0
        %477 = vmatpush1.msra.mxu0 0.0
        %478 = vmatprep.subr.mxu0 0.0
        %479 = vmatpush1.msra.mxu0 0.0
        %480 = vmatprep.subr.mxu0 0.0
        %481 = vmatpush1.msra.mxu0 0.0
        %482 = vmatprep.subr.mxu0 0.0
        %483 = vmatpush1.msra.mxu0 0.0
        %484 = vmatprep.subr.mxu0 0.0
        %485 = vmatpush1.msra.mxu0 0.0
        %486 = vmatprep.subr.mxu0 0.0
        %487 = vmatpush1.msra.mxu0 0.0
        %488 = vmatprep.subr.mxu0 0.0
        %489 = vmatpush1.msra.mxu0 0.0
        %490 = vmatprep.mubr.f32.mxu0 0.0
        %491 = vmatmul.mubr.f32.gmra.mrb[0].mxu0 %v379
        %v492 = vpop.f32.mrb[0].mxu0
        %v493 = vadd.f32 0.0, %v492
        %v494 = vpop.f32.mrb[0].mxu0
        %495 = vmatprep.mubr.f32.mxu0 0.0
        %496 = vmatmul.mubr.f32.gmra.mrb[0].mxu0 %v382
        %v497 = vpop.f32.mrb[0].mxu0
        %v498 = vadd.f32 0.0, %v497
        %v499 = vpop.f32.mrb[0].mxu0
        %500 = vmatprep.mubr.f32.mxu0 0.0
        %501 = vmatmul.mubr.f32.gmra.mrb[0].mxu0 %v385
        %v502 = vpop.f32.mrb[0].mxu0
        %v503 = vadd.f32 0.0, %v502
        %v504 = vpop.f32.mrb[0].mxu0
        %505 = vmatprep.mubr.f32.mxu0 0.0
        %506 = vmatmul.mubr.f32.gmra.mrb[0].mxu0 %v388
        %v507 = vpop.f32.mrb[0].mxu0
        %v508 = vadd.f32 0.0, %v507
        %v509 = vpop.f32.mrb[0].mxu0
        %510 = vmatprep.mubr.f32.mxu0 0.0
        %511 = vmatmul.mubr.f32.gmra.mrb[0].mxu0 %v391
        %v512 = vpop.f32.mrb[0].mxu0
        %v513 = vadd.f32 0.0, %v512
        %v514 = vpop.f32.mrb[0].mxu0
        %515 = vmatprep.mubr.f32.mxu0 0.0
        %516 = vmatmul.mubr.f32.gmra.mrb[0].mxu0 %v394
        %v517 = vpop.f32.mrb[0].mxu0
        %v518 = vadd.f32 0.0, %v517
        %v519 = vpop.f32.mrb[0].mxu0
        %520 = vmatprep.mubr.f32.mxu0 0.0
        %521 = vmatmul.mubr.f32.gmra.mrb[0].mxu0 %v397
        %v522 = vpop.f32.mrb[0].mxu0
        %v523 = vadd.f32 0.0, %v522
        %v524 = vpop.f32.mrb[0].mxu0
        %525 = vmatprep.mubr.f32.mxu0 0.0
        %526 = vmatmul.mubr.f32.gmra.mrb[0].mxu0 %v400
        %v527 = vpop.f32.mrb[0].mxu0
        %v528 = vadd.f32 0.0, %v527
        %v529 = vpop.f32.mrb[0].mxu0
        %530 = vmatprep.mubr.f32.mxu0 0.0
        %531 = vmatmul.mubr.f32.gmra.mrb[0].mxu0 %v403
        %v532 = vpop.f32.mrb[0].mxu0
        %v533 = vadd.f32 0.0, %v532
        %v534 = vpop.f32.mrb[0].mxu0
        %535 = vmatprep.mubr.f32.mxu0 0.0
        %536 = vmatmul.mubr.f32.gmra.mrb[0].mxu0 %v406
        %v537 = vpop.f32.mrb[0].mxu0
        %v538 = vadd.f32 0.0, %v537
        %v539 = vpop.f32.mrb[0].mxu0
        %540 = vmatprep.mubr.f32.mxu0 0.0
        %541 = vmatmul.mubr.f32.gmra.mrb[0].mxu0 %v409
        %v542 = vpop.f32.mrb[0].mxu0
        %v543 = vadd.f32 0.0, %v542
        %v544 = vpop.f32.mrb[0].mxu0
        %545 = vmatprep.mubr.f32.mxu0 0.0
        %546 = vmatmul.mubr.f32.gmra.mrb[0].mxu0 %v412
        %v547 = vpop.f32.mrb[0].mxu0
        %v548 = vadd.f32 0.0, %v547
        %v549 = vpop.f32.mrb[0].mxu0
        %550 = vmatprep.mubr.f32.mxu0 0.0
        %551 = vmatmul.mubr.f32.gmra.mrb[0].mxu0 %v415
        %v552 = vpop.f32.mrb[0].mxu0
        %v553 = vadd.f32 0.0, %v552
        %v554 = vpop.f32.mrb[0].mxu0
        %555 = vmatprep.mubr.f32.mxu0 0.0
        %556 = vmatmul.mubr.f32.gmra.mrb[0].mxu0 %v418
        %v557 = vpop.f32.mrb[0].mxu0
        %v558 = vadd.f32 0.0, %v557
        %v559 = vpop.f32.mrb[0].mxu0
        %560 = vmatprep.mubr.f32.mxu0 0.0
        %561 = vmatmul.mubr.f32.gmra.mrb[0].mxu0 %v421
        %v562 = vpop.f32.mrb[0].mxu0
        %v563 = vadd.f32 0.0, %v562
        %v564 = vpop.f32.mrb[0].mxu0
        %565 = vmatprep.mubr.f32.mxu0 0.0
        %566 = vmatmul.mubr.f32.gmra.mrb[0].mxu0 %v424
        %v567 = vpop.f32.mrb[0].mxu0
        %v568 = vadd.f32 0.0, %v567
        %v569 = vpop.f32.mrb[0].mxu0
        %570 = vdwg.mxu0
        %571 = vmax.xlane.f32.xlu0 %v493
        %v572 = vpop.xlane.xlu0 %571
        %573 = vmax.xlane.f32.xlu0 %v498
        %v574 = vpop.xlane.xlu0 %573
        %575 = vmax.xlane.f32.xlu0 %v503
        %v576 = vpop.xlane.xlu0 %575
        %577 = vmax.xlane.f32.xlu0 %v508
        %v578 = vpop.xlane.xlu0 %577
        %579 = vmax.xlane.f32.xlu0 %v513
        %v580 = vpop.xlane.xlu0 %579
        %581 = vmax.xlane.f32.xlu0 %v518
        %v582 = vpop.xlane.xlu0 %581
        %583 = vmax.xlane.f32.xlu0 %v523
        %v584 = vpop.xlane.xlu0 %583
        %585 = vmax.xlane.f32.xlu0 %v528
        %v586 = vpop.xlane.xlu0 %585
        %587 = vmax.xlane.f32.xlu0 %v533
        %v588 = vpop.xlane.xlu0 %587
        %589 = vmax.xlane.f32.xlu0 %v538
        %v590 = vpop.xlane.xlu0 %589
        %591 = vmax.xlane.f32.xlu0 %v543
        %v592 = vpop.xlane.xlu0 %591
        %593 = vmax.xlane.f32.xlu0 %v548
        %v594 = vpop.xlane.xlu0 %593
        %595 = vmax.xlane.f32.xlu0 %v553
        %v596 = vpop.xlane.xlu0 %595
        %597 = vmax.xlane.f32.xlu0 %v558
        %v598 = vpop.xlane.xlu0 %597
        %599 = vmax.xlane.f32.xlu0 %v563
        %v600 = vpop.xlane.xlu0 %599
        %601 = vmax.xlane.f32.xlu0 %v568
        %v602 = vpop.xlane.xlu0 %601
        %v603 = vsub.f32 %v493, %v572
        %v604 = vsub.f32 %v498, %v574
        %v605 = vsub.f32 %v503, %v576
        %v606 = vsub.f32 %v508, %v578
        %v607 = vsub.f32 %v513, %v580
        %v608 = vsub.f32 %v518, %v582
        %v609 = vsub.f32 %v523, %v584
        %v610 = vsub.f32 %v528, %v586
        %v611 = vsub.f32 %v533, %v588
        %v612 = vsub.f32 %v538, %v590
        %v613 = vsub.f32 %v543, %v592
        %v614 = vsub.f32 %v548, %v594
        %v615 = vsub.f32 %v553, %v596
        %v616 = vsub.f32 %v558, %v598
        %v617 = vsub.f32 %v563, %v600
        %v618 = vsub.f32 %v568, %v602
        %v619 = vmul.f32 %v603, 1.442695
        %v620 = vpow.pop %v619
        %v621 = vmul.f32 %v604, 1.442695
        %v622 = vpow.pop %v621
        %v623 = vmul.f32 %v605, 1.442695
        %v624 = vpow.pop %v623
        %v625 = vmul.f32 %v606, 1.442695
        %v626 = vpow.pop %v625
        %v627 = vmul.f32 %v607, 1.442695
        %v628 = vpow.pop %v627
        %v629 = vmul.f32 %v608, 1.442695
        %v630 = vpow.pop %v629
        %v631 = vmul.f32 %v609, 1.442695
        %v632 = vpow.pop %v631
        %v633 = vmul.f32 %v610, 1.442695
        %v634 = vpow.pop %v633
        %v635 = vmul.f32 %v611, 1.442695
        %v636 = vpow.pop %v635
        %v637 = vmul.f32 %v612, 1.442695
        %v638 = vpow.pop %v637
        %v639 = vmul.f32 %v613, 1.442695
        %v640 = vpow.pop %v639
        %v641 = vmul.f32 %v614, 1.442695
        %v642 = vpow.pop %v641
        %v643 = vmul.f32 %v615, 1.442695
        %v644 = vpow.pop %v643
        %v645 = vmul.f32 %v616, 1.442695
        %v646 = vpow.pop %v645
        %v647 = vmul.f32 %v617, 1.442695
        %v648 = vpow.pop %v647
        %v649 = vmul.f32 %v618, 1.442695
        %v650 = vpow.pop %v649
        %651 = vadd.xlane.f32.xlu0 %v620
        %v652 = vpop.xlane.xlu0 %651
        %653 = vadd.xlane.f32.xlu0 %v622
        %v654 = vpop.xlane.xlu0 %653
        %655 = vadd.xlane.f32.xlu0 %v624
        %v656 = vpop.xlane.xlu0 %655
        %657 = vadd.xlane.f32.xlu0 %v626
        %v658 = vpop.xlane.xlu0 %657
        %659 = vadd.xlane.f32.xlu0 %v628
        %v660 = vpop.xlane.xlu0 %659
        %661 = vadd.xlane.f32.xlu0 %v630
        %v662 = vpop.xlane.xlu0 %661
        %663 = vadd.xlane.f32.xlu0 %v632
        %v664 = vpop.xlane.xlu0 %663
        %665 = vadd.xlane.f32.xlu0 %v634
        %v666 = vpop.xlane.xlu0 %665
        %667 = vadd.xlane.f32.xlu0 %v636
        %v668 = vpop.xlane.xlu0 %667
        %669 = vadd.xlane.f32.xlu0 %v638
        %v670 = vpop.xlane.xlu0 %669
        %671 = vadd.xlane.f32.xlu0 %v640
        %v672 = vpop.xlane.xlu0 %671
        %673 = vadd.xlane.f32.xlu0 %v642
        %v674 = vpop.xlane.xlu0 %673
        %675 = vadd.xlane.f32.xlu0 %v644
        %v676 = vpop.xlane.xlu0 %675
        %677 = vadd.xlane.f32.xlu0 %v646
        %v678 = vpop.xlane.xlu0 %677
        %679 = vadd.xlane.f32.xlu0 %v648
        %v680 = vpop.xlane.xlu0 %679
        %681 = vadd.xlane.f32.xlu0 %v650
        %v682 = vpop.xlane.xlu0 %681
        %v683 = vrcp.pop %v652
        %v684 = vrcp.pop %v654
        %v685 = vrcp.pop %v656
        %v686 = vrcp.pop %v658
        %v687 = vrcp.pop %v660
        %v688 = vrcp.pop %v662
        %v689 = vrcp.pop %v664
        %v690 = vrcp.pop %v666
        %v691 = vrcp.pop %v668
        %v692 = vrcp.pop %v670
        %v693 = vrcp.pop %v672
        %v694 = vrcp.pop %v674
        %v695 = vrcp.pop %v676
        %v696 = vrcp.pop %v678
        %v697 = vrcp.pop %v680
        %v698 = vrcp.pop %v682
        %v699 = vmul.f32 %v620, %v683
        %v700 = vmul.f32 %v622, %v684
        %v701 = vmul.f32 %v624, %v685
        %v702 = vmul.f32 %v626, %v686
        %v703 = vmul.f32 %v628, %v687
        %v704 = vmul.f32 %v630, %v688
        %v705 = vmul.f32 %v632, %v689
        %v706 = vmul.f32 %v634, %v690
        %v707 = vmul.f32 %v636, %v691
        %v708 = vmul.f32 %v638, %v692
        %v709 = vmul.f32 %v640, %v693
        %v710 = vmul.f32 %v642, %v694
        %v711 = vmul.f32 %v644, %v695
        %v712 = vmul.f32 %v646, %v696
        %v713 = vmul.f32 %v648, %v697
        %v714 = vmul.f32 %v650, %v698
        %715 = vmatprep.subr.mxu0 0.0
        %716 = vmatpush1.msra.mxu0 %v343
        %717 = vmatprep.subr.mxu0 0.0
        %718 = vmatpush1.msra.mxu0 %v344
        %719 = vmatprep.subr.mxu0 0.0
        %720 = vmatpush1.msra.mxu0 %v345
        %721 = vmatprep.subr.mxu0 0.0
        %722 = vmatpush1.msra.mxu0 %v346
        %723 = vmatprep.subr.mxu0 0.0
        %724 = vmatpush1.msra.mxu0 %v347
        %725 = vmatprep.subr.mxu0 0.0
        %726 = vmatpush1.msra.mxu0 %v348
        %727 = vmatprep.subr.mxu0 0.0
        %728 = vmatpush1.msra.mxu0 %v349
        %729 = vmatprep.subr.mxu0 0.0
        %730 = vmatpush1.msra.mxu0 %v350
        %731 = vmatprep.subr.mxu0 0.0
        %732 = vmatpush1.msra.mxu0 %v351
        %733 = vmatprep.subr.mxu0 0.0
        %734 = vmatpush1.msra.mxu0 %v352
        %735 = vmatprep.subr.mxu0 0.0
        %736 = vmatpush1.msra.mxu0 %v353
        %737 = vmatprep.subr.mxu0 0.0
        %738 = vmatpush1.msra.mxu0 %v354
        %739 = vmatprep.subr.mxu0 0.0
        %740 = vmatpush1.msra.mxu0 %v355
        %741 = vmatprep.subr.mxu0 0.0
        %742 = vmatpush1.msra.mxu0 %v356
        %743 = vmatprep.subr.mxu0 0.0
        %744 = vmatpush1.msra.mxu0 %v357
        %745 = vmatprep.subr.mxu0 0.0
        %746 = vmatpush1.msra.mxu0 %v358
        %747 = vmatprep.subr.mxu0 0.0
        %748 = vmatpush1.msra.mxu0 0.0
        %749 = vmatprep.subr.mxu0 0.0
        %750 = vmatpush1.msra.mxu0 0.0
        %751 = vmatprep.subr.mxu0 0.0
        %752 = vmatpush1.msra.mxu0 0.0
        %753 = vmatprep.subr.mxu0 0.0
        %754 = vmatpush1.msra.mxu0 0.0
        %755 = vmatprep.subr.mxu0 0.0
        %756 = vmatpush1.msra.mxu0 0.0
        %757 = vmatprep.subr.mxu0 0.0
        %758 = vmatpush1.msra.mxu0 0.0
        %759 = vmatprep.subr.mxu0 0.0
        %760 = vmatpush1.msra.mxu0 0.0
        %761 = vmatprep.subr.mxu0 0.0
        %762 = vmatpush1.msra.mxu0 0.0
        %763 = vmatprep.subr.mxu0 0.0
        %764 = vmatpush1.msra.mxu0 0.0
        %765 = vmatprep.subr.mxu0 0.0
        %766 = vmatpush1.msra.mxu0 0.0
        %767 = vmatprep.subr.mxu0 0.0
        %768 = vmatpush1.msra.mxu0 0.0
        %769 = vmatprep.subr.mxu0 0.0
        %770 = vmatpush1.msra.mxu0 0.0
        %771 = vmatprep.subr.mxu0 0.0
        %772 = vmatpush1.msra.mxu0 0.0
        %773 = vmatprep.subr.mxu0 0.0
        %774 = vmatpush1.msra.mxu0 0.0
        %775 = vmatprep.subr.mxu0 0.0
        %776 = vmatpush1.msra.mxu0 0.0
        %777 = vmatprep.subr.mxu0 0.0
        %778 = vmatpush1.msra.mxu0 0.0
        %779 = vmatprep.mubr.f32.mxu0 0.0
        %780 = vmatmul.mubr.f32.gmra.mrb[0].mxu0 %v699
        %v781 = vpop.f32.mrb[0].mxu0
        %v782 = vadd.f32 0.0, %v781
        %v783 = vpop.f32.mrb[0].mxu0
        %784 = vmatprep.mubr.f32.mxu0 0.0
        %785 = vmatmul.mubr.f32.gmra.mrb[0].mxu0 %v700
        %v786 = vpop.f32.mrb[0].mxu0
        %v787 = vadd.f32 0.0, %v786
        %v788 = vpop.f32.mrb[0].mxu0
        %789 = vmatprep.mubr.f32.mxu0 0.0
        %790 = vmatmul.mubr.f32.gmra.mrb[0].mxu0 %v701
        %v791 = vpop.f32.mrb[0].mxu0
        %v792 = vadd.f32 0.0, %v791
        %v793 = vpop.f32.mrb[0].mxu0
        %794 = vmatprep.mubr.f32.mxu0 0.0
        %795 = vmatmul.mubr.f32.gmra.mrb[0].mxu0 %v702
        %v796 = vpop.f32.mrb[0].mxu0
        %v797 = vadd.f32 0.0, %v796
        %v798 = vpop.f32.mrb[0].mxu0
        %799 = vmatprep.mubr.f32.mxu0 0.0
        %800 = vmatmul.mubr.f32.gmra.mrb[0].mxu0 %v703
        %v801 = vpop.f32.mrb[0].mxu0
        %v802 = vadd.f32 0.0, %v801
        %v803 = vpop.f32.mrb[0].mxu0
        %804 = vmatprep.mubr.f32.mxu0 0.0
        %805 = vmatmul.mubr.f32.gmra.mrb[0].mxu0 %v704
        %v806 = vpop.f32.mrb[0].mxu0
        %v807 = vadd.f32 0.0, %v806
        %v808 = vpop.f32.mrb[0].mxu0
        %809 = vmatprep.mubr.f32.mxu0 0.0
        %810 = vmatmul.mubr.f32.gmra.mrb[0].mxu0 %v705
        %v811 = vpop.f32.mrb[0].mxu0
        %v812 = vadd.f32 0.0, %v811
        %v813 = vpop.f32.mrb[0].mxu0
        %814 = vmatprep.mubr.f32.mxu0 0.0
        %815 = vmatmul.mubr.f32.gmra.mrb[0].mxu0 %v706
        %v816 = vpop.f32.mrb[0].mxu0
        %v817 = vadd.f32 0.0, %v816
        %v818 = vpop.f32.mrb[0].mxu0
        %819 = vmatprep.mubr.f32.mxu0 0.0
        %820 = vmatmul.mubr.f32.gmra.mrb[0].mxu0 %v707
        %v821 = vpop.f32.mrb[0].mxu0
        %v822 = vadd.f32 0.0, %v821
        %v823 = vpop.f32.mrb[0].mxu0
        %824 = vmatprep.mubr.f32.mxu0 0.0
        %825 = vmatmul.mubr.f32.gmra.mrb[0].mxu0 %v708
        %v826 = vpop.f32.mrb[0].mxu0
        %v827 = vadd.f32 0.0, %v826
        %v828 = vpop.f32.mrb[0].mxu0
        %829 = vmatprep.mubr.f32.mxu0 0.0
        %830 = vmatmul.mubr.f32.gmra.mrb[0].mxu0 %v709
        %v831 = vpop.f32.mrb[0].mxu0
        %v832 = vadd.f32 0.0, %v831
        %v833 = vpop.f32.mrb[0].mxu0
        %834 = vmatprep.mubr.f32.mxu0 0.0
        %835 = vmatmul.mubr.f32.gmra.mrb[0].mxu0 %v710
        %v836 = vpop.f32.mrb[0].mxu0
        %v837 = vadd.f32 0.0, %v836
        %v838 = vpop.f32.mrb[0].mxu0
        %839 = vmatprep.mubr.f32.mxu0 0.0
        %840 = vmatmul.mubr.f32.gmra.mrb[0].mxu0 %v711
        %v841 = vpop.f32.mrb[0].mxu0
        %v842 = vadd.f32 0.0, %v841
        %v843 = vpop.f32.mrb[0].mxu0
        %844 = vmatprep.mubr.f32.mxu0 0.0
        %845 = vmatmul.mubr.f32.gmra.mrb[0].mxu0 %v712
        %v846 = vpop.f32.mrb[0].mxu0
        %v847 = vadd.f32 0.0, %v846
        %v848 = vpop.f32.mrb[0].mxu0
        %849 = vmatprep.mubr.f32.mxu0 0.0
        %850 = vmatmul.mubr.f32.gmra.mrb[0].mxu0 %v713
        %v851 = vpop.f32.mrb[0].mxu0
        %v852 = vadd.f32 0.0, %v851
        %v853 = vpop.f32.mrb[0].mxu0
        %854 = vmatprep.mubr.f32.mxu0 0.0
        %855 = vmatmul.mubr.f32.gmra.mrb[0].mxu0 %v714
        %v856 = vpop.f32.mrb[0].mxu0
        %v857 = vadd.f32 0.0, %v856
        %v858 = vpop.f32.mrb[0].mxu0
        %859 = vdwg.mxu0
        %860 = vst.msk [vmem:[%s316] sm:$0xff] %vm377, %v782
        %861 = vst.msk [vmem:[%s316 + $0x8] sm:$0xff] %vm377, %v787
        %862 = vst.msk [vmem:[%s316 + $0x10] sm:$0xff] %vm377, %v792
        %863 = vst.msk [vmem:[%s316 + $0x18] sm:$0xff] %vm377, %v797
        %864 = vst.msk [vmem:[%s316 + $0x20] sm:$0xff] %vm377, %v802
        %865 = vst.msk [vmem:[%s316 + $0x28] sm:$0xff] %vm377, %v807
        %866 = vst.msk [vmem:[%s316 + $0x30] sm:$0xff] %vm377, %v812
        %867 = vst.msk [vmem:[%s316 + $0x38] sm:$0xff] %vm377, %v817
        %868 = vst.msk [vmem:[%s316 + $0x40] sm:$0xff] %vm377, %v822
        %869 = vst.msk [vmem:[%s316 + $0x48] sm:$0xff] %vm377, %v827
        %870 = vst.msk [vmem:[%s316 + $0x50] sm:$0xff] %vm377, %v832
        %871 = vst.msk [vmem:[%s316 + $0x58] sm:$0xff] %vm377, %v837
        %872 = vst.msk [vmem:[%s316 + $0x60] sm:$0xff] %vm377, %v842
        %873 = vst.msk [vmem:[%s316 + $0x68] sm:$0xff] %vm377, %v847
        %874 = vst.msk [vmem:[%s316 + $0x70] sm:$0xff] %vm377, %v852
        %875 = vst.msk [vmem:[%s316 + $0x78] sm:$0xff] %vm377, %v857
        %876 = vst [vmem:[%s287] sm:$0xff] %v699
        %877 = vst [vmem:[%s287 + $0x8] sm:$0xff] %v700
        %878 = vst [vmem:[%s287 + $0x10] sm:$0xff] %v701
        %879 = vst [vmem:[%s287 + $0x18] sm:$0xff] %v702
        %880 = vst [vmem:[%s287 + $0x20] sm:$0xff] %v703
        %881 = vst [vmem:[%s287 + $0x28] sm:$0xff] %v704
        %882 = vst [vmem:[%s287 + $0x30] sm:$0xff] %v705
        %883 = vst [vmem:[%s287 + $0x38] sm:$0xff] %v706
        %884 = vst [vmem:[%s287 + $0x40] sm:$0xff] %v707
        %885 = vst [vmem:[%s287 + $0x48] sm:$0xff] %v708
        %886 = vst [vmem:[%s287 + $0x50] sm:$0xff] %v709
        %887 = vst [vmem:[%s287 + $0x58] sm:$0xff] %v710
        %888 = vst [vmem:[%s287 + $0x60] sm:$0xff] %v711
        %889 = vst [vmem:[%s287 + $0x68] sm:$0xff] %v712
        %890 = vst [vmem:[%s287 + $0x70] sm:$0xff] %v713
        %891 = vst [vmem:[%s287 + $0x78] sm:$0xff] %v714
        %s892 = smul.u32 16, %s26
        %p893 = scmp.lt.s32.totalorder %s25, 7
        %s894 = scalar_select %p893, %s25, 7
        %p895 = scmp.lt.s32.totalorder %s892, 15
        %s896 = scalar_select %p895, %s892, 15
        %s897 = smul.addr %s894, 16
        %s898 = sadd.s32 %s896, %s897
        %s899 = smul.addr %s898, 8
        %s900 = scalar_lea.vmem %s4, %s899
        %s901 = sand.u32 %s172, 1
        %s902 = scalar_lea.sflag [#allocation4], %s901
        %s903 = sand.u32 %s172, 1
        %s904 = smul.addr %s903, 128
        %s905 = scalar_lea.vmem [#allocation3], %s904
        // Predicated region
        $region37: #{tpu_custom_call.1} parent=35 // pred_check
          %p906 = pneg %p154
        $region38: #{tpu_custom_call.1} parent=35 // pred_check_branch
          %908 = sbr.rel (%p906) target = $region40
        $region39: #{tpu_custom_call.1} parent=35 // pred_region
          %s909 = smul.u32 16, %s26
        $region40: #{tpu_custom_call.1} parent=35 // pred_fallthru
          _
        // Predicated region
        $region41: #{tpu_custom_call.1} parent=35 // pred_check
          %p910 = pneg %p182
        $region42: #{tpu_custom_call.1} parent=35 // pred_check_branch
          %912 = sbr.rel (%p910) target = $region44
        $region43: #{tpu_custom_call.1} parent=35 // pred_region
          %s913 = smul.u32 16, %s26
          %s915 = ssub.s32 2048, 2048
          %916 = vsyncadd %s902, %s915
          %s917 = smul.addr %s25, 16
          %s918 = sadd.s32 %s913, %s917
          %s919 = smul.addr %s918, 128
          %s920 = scalar_lea.hbm %s5, %s919
          %s921 = sshll.u32 %s905, 4
          %s922 = int_to_ptr.vmem [resolvable:$true] %s921
          %927 = dma.vmem_to_hbm [thread:$0]  %s922, 2048, %s920, %s902, 128, 128, 8
        $region44: #{tpu_custom_call.1} parent=35 // pred_fallthru
          _
      $region36: #{tpu_custom_call.1} parent=5 // pred_fallthru
        _
      %p928 = scmp.le.s32.totalorder 2, %s16
      // Predicated region
      $region45: #{tpu_custom_call.1} parent=5 // pred_check
        %p929 = pneg %p928
      $region46: #{tpu_custom_call.1} parent=5 // pred_check_branch
        %931 = sbr.rel (%p929) target = $region48
      $region47: #{tpu_custom_call.1} parent=5 // pred_region
        %s932 = ssub.s32 %s16, 2
        // Predicated region
        $region49: #{tpu_custom_call.1} parent=47 // pred_check
          %p933 = pneg %p160
        $region50: #{tpu_custom_call.1} parent=47 // pred_check_branch
          %935 = sbr.rel (%p933) target = $region52
        $region51: #{tpu_custom_call.1} parent=47 // pred_region
          %s936 = smul.u32 16, %s28
          %p937 = scmp.lt.s32.totalorder %s27, 7
          %s938 = scalar_select %p937, %s27, 7
          %p939 = scmp.lt.s32.totalorder %s936, 15
          %s940 = scalar_select %p939, %s936, 15
          %s941 = smul.addr %s938, 16
          %s942 = sadd.s32 %s940, %s941
          %s943 = smul.addr %s942, 8
          %s944 = scalar_lea.vmem %s4, %s943
        $region52: #{tpu_custom_call.1} parent=47 // pred_fallthru
          _
        // Predicated region
        $region53: #{tpu_custom_call.1} parent=47 // pred_check
          %p945 = pneg %p188
        $region54: #{tpu_custom_call.1} parent=47 // pred_check_branch
          %947 = sbr.rel (%p945) target = $region56
        $region55: #{tpu_custom_call.1} parent=47 // pred_region
          %s948 = sand.u32 %s173, 1
          %s949 = scalar_lea.sflag [#allocation4], %s948
          %s950 = sand.u32 %s173, 1
          %s951 = smul.addr %s950, 128
          %s952 = scalar_lea.vmem [#allocation3], %s951
          %953 = dma.done %s949, 2048
        $region56: #{tpu_custom_call.1} parent=47 // pred_fallthru
          _
      $region48: #{tpu_custom_call.1} parent=5 // pred_fallthru
        _
    $region6: #{tpu_custom_call.1} parent=1 // loop_footer
      %s20 = sadd.s32 1, %s16
    $region7: #{tpu_custom_call.1} parent=1 // loop_footer_branch
      %15 = sbr.rel target = $region3
    $region8: #{tpu_custom_call.1} parent=1 // loop_exit
      _
    %954 = vsyncpa [#allocation4], 1
    %s955 = scalar_lea.sflag [#allocation4], 1
    %956 = vsyncpa %s955, 1

</llo_original>
